<compile_context>
chip_gen: v6e
topology: v6e:2x2x1
jax: 0.10.0
libtpu: 0.0.40
codegen_flags: <defaults>
</compile_context>

<pallas_src>
import math
import numpy as np
import jax
import jax.numpy as jnp
from jax import lax
from jax.experimental import pallas as pl
from jax.experimental.pallas import tpu as pltpu

HIDDEN = 16        # hidden_size
INPUT_SIZE = 1
OUTPUT_SIZE = 1
NHEAD = 8
LN_EPS = 1e-5
MA_KERNEL = 25
NEG_BIG = 1e30     # additive mask for cross-batch encoder attention scores


# ----------------------------- small matmul helpers (MXU) -----------------------------
def _mm(a, b):      # a @ b
    return lax.dot_general(a, b, (((1,), (0,)), ((), ())),
                           preferred_element_type=jnp.float32)


def _mm_nt(a, b):   # a @ b.T
    return lax.dot_general(a, b, (((1,), (1,)), ((), ())),
                           preferred_element_type=jnp.float32)


# ------------------------------- host-side constants -----------------------------------
def positional_encoding(n_rows, d_model):
    pe = np.zeros((n_rows, d_model), np.float32)
    position = np.arange(n_rows, dtype=np.float32)[:, None]
    div_term = np.exp(np.arange(0, d_model, 2, dtype=np.float32)
                      * (-math.log(10000.0) / d_model))
    pe[:, 0::2] = np.sin(position * div_term)
    pe[:, 1::2] = np.cos(position * div_term)
    return jnp.asarray(pe)


def moving_avg_matrix(S, kernel_size):
    pad = kernel_size // 2
    A = np.zeros((S, S), np.float32)
    for s in range(S):
        lo = max(0, s - pad)
        hi = min(S - 1, s + pad)
        A[s, lo:hi + 1] = 1.0 / (hi - lo + 1)   # count_include_pad=False
    return jnp.asarray(A)


# -------------------------- parameter packing (one DMA slab) ---------------------------
def pack_params(p, B, S):
    """Pack all weights/constants into a single 8-row-aligned f32 slab."""
    N = B * S
    g = lambda k: np.asarray(p[k], np.float32)
    D = g('emb_w').shape[1]
    hd = D // NHEAD

    # embedding bias + positional encoding (PE indexed by BATCH -> per-batch bias)
    bias = g('emb_b') + g('pe')                     # (B, D)
    bias_full = np.repeat(bias, S, axis=0)          # (N, D): row (b*S + s) -> bias[b]

    # per-batch (block-diagonal) mask for the encoder attention over flattened rows
    same_batch = np.kron(np.eye(B, dtype=np.float32), np.ones((S, S), np.float32))
    nmask = (same_batch - 1.0) * NEG_BIG            # 0 within a batch, -1e30 across

    # last-timestep selector + last-timestep moving-average rows:
    #   rows 0..B-1   pick h[b, S-1]          (0/1 selector)
    #   rows B..2B-1  produce trend[b, S-1]   (averaging row of A at position S-1)
    A = g('A')
    sel = np.zeros((2 * B, N), np.float32)
    for b in range(B):
        sel[b, (b + 1) * S - 1] = 1.0
        sel[B + b, b * S:(b + 1) * S] = A[S - 1, :]

    # fold per-head MHA scale (hd**-0.5) into the q projection host-side
    scale = hd ** -0.5
    wqkv = np.concatenate([g('wq') * scale, g('wk'), g('wv')], axis=1)   # (D, 3D)
    bqkv = np.concatenate([g('bq') * scale, g('bk'), g('bv')], axis=1)   # (1, 3D)

    # fold the output head host-side: (ctx@wo + bo + trend)@fcw + fcb
    wofc = g('wo') @ g('fcw')                       # (D, OUT)
    bofc = g('bo') @ g('fcw') + g('fcb')            # (1, OUT)

    pieces = [
        ('emb_w', g('emb_w')),                                           # (1, D)
        ('bias',  bias_full),                                            # (N, D)
        ('ln1',   np.concatenate([g('n1w'), g('n1b')], axis=0)),         # (2, D)
        ('ln2',   np.concatenate([g('n2w'), g('n2b')], axis=0)),         # (2, D)
        ('f1w',   g('f1w')),                                             # (D, 4D)
        ('f1b',   g('f1b')),                                             # (1, 4D)
        ('f2w',   g('f2w')),                                             # (4D, D)
        ('f2b',   g('f2b')),                                             # (1, D)
        ('wqkv',  wqkv),                                                 # (D, 3D)
        ('bqkv',  bqkv),                                                 # (1, 3D)
        ('M',     g('M')),                                               # (D, H)
        ('wofc',  wofc),                                                 # (D, OUT)
        ('fcw',   g('fcw')),                                             # (D, OUT)
        ('bofc',  bofc),                                                 # (1, OUT)
        ('nmask', nmask),                                                # (N, N)
        ('sel',   sel),                                                  # (2B, N)
    ]

    width = max(arr.shape[1] for _, arr in pieces)
    offsets, rows = {}, 0
    for name, arr in pieces:
        offsets[name] = rows
        rows += ((arr.shape[0] + 7) // 8) * 8       # sublane-align every piece
    slab = np.zeros((rows, width), np.float32)
    for name, arr in pieces:
        o = offsets[name]
        slab[o:o + arr.shape[0], :arr.shape[1]] = arr
    return jnp.asarray(slab), offsets


# ----------------------------------- Pallas kernel -------------------------------------
def make_kernel(B, S, D, H, OUT, offsets):
    N = B * S
    ac_scale = D ** -0.5          # AutoCorrelation scale (d_model ** -0.5)

    def kernel(x_ref, slab_ref, out_ref):
        def piece(name, r, c):
            o = offsets[name]                       # static slice -> plain vector load
            return slab_ref[o:o + r, 0:c]

        def layer_norm(z, wb):
            mu = jnp.mean(z, axis=-1, keepdims=True)
            var = jnp.mean((z - mu) ** 2, axis=-1, keepdims=True)
            return (z - mu) * lax.rsqrt(var + LN_EPS) * wb[0:1, :] + wb[1:2, :]

        # --- embedding + positional encoding (all batches flattened to rows) ---
        h = x_ref[...] * piece('emb_w', 1, D) + piece('bias', N, D)       # (N, D)

        # --- AutoformerEncoderLayer (full sequence needed: attention denominators,
        #     LayerNorm stats and moving-average window; dropout == identity) ---
        res = h
        sc = _mm_nt(h, h) * ac_scale + piece('nmask', N, N)   # mask cross-batch scores
        e = jnp.exp(sc - jnp.max(sc, axis=-1, keepdims=True))
        attn = e / jnp.sum(e, axis=-1, keepdims=True)         # exact divide: feeds deep
        h = _mm(attn, res)
        h = layer_norm(h + res, piece('ln1', 2, D))
        res = h
        f = jnp.maximum(_mm(h, piece('f1w', D, 4 * D)) + piece('f1b', 1, 4 * D), 0.0)
        f = _mm(f, piece('f2w', 4 * D, D)) + piece('f2b', 1, D)
        h = layer_norm(f + res, piece('ln2', 2, D))

        # --- last timestep only (dead-work elimination): h_last and trend_last in
        #     ONE (2B, N) @ (N, D) matmul against the packed selector matrix ---
        hl_tl = _mm(piece('sel', 2 * B, N), h)                 # (2B, D)
        h_last = hl_tl[0:B, :]
        trend_last = hl_tl[B:2 * B, :]
        seasonal_last = h_last - trend_last                    # (B, D)

        # --- cross_seasonal_interaction: MHA over the BATCH axis (seq-first quirk),
        #     evaluated only at the last sequence position; scale folded into wq ---
        qkv = _mm(seasonal_last, piece('wqkv', D, 3 * D)) + piece('bqkv', 1, 3 * D)
        q = qkv[:, 0:D]
        k = qkv[:, D:2 * D]
        v = qkv[:, 2 * D:3 * D]

        Mh = piece('M', D, H)                                  # head membership (D, H)
        # all (query batch i, key batch j) pairs stacked -> ONE matmul for head scores
        qk = jnp.concatenate([q[i:i + 1, :] * k[j:j + 1, :]
                              for i in range(B) for j in range(B)], axis=0)   # (B*B, D)
        scores = _mm(qk, Mh)                                   # (B*B, H)

        # softmax over key batch j, per (query batch i, head h)
        aw_rows = []
        for i in range(B):
            blk = [scores[i * B + j:i * B + j + 1, :] for j in range(B)]
            m = blk[0]
            for j in range(1, B):
                m = jnp.maximum(m, blk[j])
            es = [jnp.exp(b_ - m) for b_ in blk]
            den = es[0]
            for j in range(1, B):
                den = den + es[j]
            inv = pl.reciprocal(den, approx=True)              # EUP slot, nearly free
            aw_rows.extend([ej * inv for ej in es])
        aw = jnp.concatenate(aw_rows, axis=0)                  # (B*B, H)

        # ONE matmul expands per-head weights back to D lanes, then weight the values
        w_full = _mm_nt(aw, Mh)                                # (B*B, D)
        ctx_rows = []
        for i in range(B):
            acc = w_full[i * B:i * B + 1, :] * v[0:1, :]
            for j in range(1, B):
                acc = acc + w_full[i * B + j:i * B + j + 1, :] * v[j:j + 1, :]
            ctx_rows.append(acc)
        ctx = jnp.concatenate(ctx_rows, axis=0)                # (B, D)

        # --- output head: wo/fc folded host-side (wofc = wo@fcw, bofc = bo@fcw+fcb) ---
        out_ref[...] = (_mm(ctx, piece('wofc', D, OUT))
                        + _mm(trend_last, piece('fcw', D, OUT))
                        + piece('bofc', 1, OUT))

    return kernel


# ----------------------------------- wrapper / glue ------------------------------------
def build_autoformer(p, B, S):
    """Pack parameters once; return forward(x) and forward_windows(xw) callables."""
    D = int(np.asarray(p['emb_w']).shape[1])
    N = B * S
    slab, offsets = pack_params(p, B, S)
    kernel = make_kernel(B, S, D, NHEAD, OUTPUT_SIZE, offsets)

    def _call(xw):                                   # xw: (W, N, 1) flattened windows
        W = xw.shape[0]
        return pl.pallas_call(
            kernel,
            out_shape=jax.ShapeDtypeStruct((W, B, OUTPUT_SIZE), jnp.float32),
            grid=(W,),
            in_specs=[
                # x walks the window axis (leading dim squeezed away in the kernel)
                pl.BlockSpec((None, N, 1), lambda w: (w, 0, 0)),
                # weight slab: same block every step -> DMA'd once, stays VMEM-resident
                pl.BlockSpec(slab.shape, lambda w: (0, 0)),
            ],
            out_specs=pl.BlockSpec((None, B, OUTPUT_SIZE), lambda w: (w, 0, 0)),
            compiler_params=pltpu.CompilerParams(
                # independent windows -> megacore-shardable on v7x, no-op on v5e/v6e
                dimension_semantics=("parallel",)),
        )(xw, slab)

    def forward(x):                                  # x: (B, S, 1) — single window
        return _call(x.reshape(1, N, 1))[0]

    def forward_windows(xw):                         # xw: (W, B, S, 1) — many windows
        return _call(xw.reshape(xw.shape[0], N, 1))

    return forward, forward_windows


def init_params(key, B, S, D=HIDDEN, H=NHEAD, in_size=INPUT_SIZE, out_size=OUTPUT_SIZE):
    ks = jax.random.split(key, 20)

    def u(k, shape, fan_in):
        bound = 1.0 / math.sqrt(fan_in)
        return jax.random.uniform(k, shape, jnp.float32, -bound, bound)

    p = {}
    p['emb_w'] = u(ks[0], (in_size, D), in_size)
    p['emb_b'] = u(ks[1], (1, D), in_size)
    p['n1w'] = 1.0 + 0.05 * jax.random.normal(ks[2], (1, D), jnp.float32)
    p['n1b'] = 0.05 * jax.random.normal(ks[3], (1, D), jnp.float32)
    p['n2w'] = 1.0 + 0.05 * jax.random.normal(ks[4], (1, D), jnp.float32)
    p['n2b'] = 0.05 * jax.random.normal(ks[5], (1, D), jnp.float32)
    p['f1w'] = u(ks[6], (D, 4 * D), D)
    p['f1b'] = u(ks[7], (1, 4 * D), D)
    p['f2w'] = u(ks[8], (4 * D, D), 4 * D)
    p['f2b'] = u(ks[9], (1, D), 4 * D)
    p['wq'] = u(ks[10], (D, D), D)
    p['bq'] = u(ks[11], (1, D), D)
    p['wk'] = u(ks[12], (D, D), D)
    p['bk'] = u(ks[13], (1, D), D)
    p['wv'] = u(ks[14], (D, D), D)
    p['bv'] = u(ks[15], (1, D), D)
    p['wo'] = u(ks[16], (D, D), D)
    p['bo'] = u(ks[17], (1, D), D)
    p['fcw'] = u(ks[18], (D, out_size), D)
    p['fcb'] = u(ks[19], (1, out_size), D)
    # constants
    p['pe'] = positional_encoding(B, D)              # pe[:x.size(0)] == pe indexed by batch
    p['A'] = moving_avg_matrix(S, MA_KERNEL)
    hd = D // H
    M = np.zeros((D, H), np.float32)
    for d in range(D):
        M[d, d // hd] = 1.0
    p['M'] = jnp.asarray(M)
    return p


# ------------------------------- pure-JAX reference ------------------------------------
def autoformer_ref(x, p, H=NHEAD):
    B, S, _ = x.shape
    D = p['emb_w'].shape[1]
    hd = D // H

    def ln(z, w, bb):
        mu = jnp.mean(z, axis=-1, keepdims=True)
        var = jnp.mean((z - mu) ** 2, axis=-1, keepdims=True)
        return (z - mu) / jnp.sqrt(var + LN_EPS) * w + bb

    h = jnp.einsum('bsi,id->bsd', x, p['emb_w']) + p['emb_b'][0]
    h = h + p['pe'][:, None, :]
    res = h
    sc = jnp.einsum('bsd,btd->bst', h, h) * D ** -0.5
    attn = jax.nn.softmax(sc, axis=-1)
    h = jnp.einsum('bst,btd->bsd', attn, res)
    h = ln(h + res, p['n1w'][0], p['n1b'][0])
    res = h
    f = jax.nn.relu(h @ p['f1w'] + p['f1b'][0])
    f = f @ p['f2w'] + p['f2b'][0]
    h = ln(f + res, p['n2w'][0], p['n2b'][0])
    trend = jnp.einsum('st,btd->bsd', p['A'], h)
    seasonal = h - trend
    q = (seasonal @ p['wq'] + p['bq'][0]).reshape(B, S, H, hd)
    k = (seasonal @ p['wk'] + p['bk'][0]).reshape(B, S, H, hd)
    v = (seasonal @ p['wv'] + p['bv'][0]).reshape(B, S, H, hd)
    sc = jnp.einsum('ishd,jshd->shij', q, k) * hd ** -0.5
    aw = jax.nn.softmax(sc, axis=-1)
    ctx = jnp.einsum('shij,jshd->ishd', aw, v).reshape(B, S, D)
    attn_out = ctx @ p['wo'] + p['bo'][0]
    y = attn_out + trend
    return y[:, -1, :] @ p['fcw'] + p['fcb'][0]


if __name__ == "__main__":
    B, S = 2, 8
    key = jax.random.PRNGKey(0)
    kx, kp = jax.random.split(key)
    params = init_params(kp, B, S)
    forward, forward_windows = build_autoformer(params, B, S)

    # single window — matches the PyTorch module's forward(x) semantics
    x = jax.random.normal(kx, (B, S, INPUT_SIZE), jnp.float32)
    out = jax.block_until_ready(forward(x))
    ref = autoformer_ref(x, params)
    # 1e-3 tolerance covers the approximate reciprocal in the cross-attention softmax.
    np.testing.assert_allclose(np.asarray(out), np.asarray(ref), rtol=1e-3, atol=1e-3)

    # many independent windows amortized in ONE pallas_call (grid over windows; the
    # weight slab stays VMEM-resident; axis is "parallel" for v7x megacore)
    W = 4
    xw = jax.random.normal(jax.random.PRNGKey(1), (W, B, S, INPUT_SIZE), jnp.float32)
    outw = jax.block_until_ready(forward_windows(xw))
    refw = jax.vmap(lambda xi: autoformer_ref(xi, params))(xw)
    np.testing.assert_allclose(np.asarray(outw), np.asarray(refw), rtol=1e-3, atol=1e-3)

    print("KERNEL_OK")
</pallas_src>

<mosaic_0001>
module attributes {stable_mosaic.version = 11 : i64} {
  func.func @kernel(%arg0: i32, %arg1: memref<1x16x1xf32, #tpu.memory_space<vmem>>, %arg2: memref<240x64xf32, #tpu.memory_space<vmem>>, %arg3: memref<1x2x1xf32, #tpu.memory_space<vmem>>) attributes {dimension_semantics = [#tpu.dimension_semantics<parallel>], iteration_bounds = array<i64: 1>, scalar_prefetch = 0 : i64, scratch_operands = 0 : i64, tpu.core_type = #tpu.core_type<tc>, window_params = [{transform_indices = @transform_0, window_bounds = array<i64: 1, 16, 1>}, {pipeline_mode = #tpu.pipeline_mode<synchronous>, transform_indices = @transform_1, window_bounds = array<i64: 240, 64>}, {transform_indices = @transform_2, window_bounds = array<i64: 1, 2, 1>}]} {
    %c0 = arith.constant 0 : index
    %c0_0 = arith.constant 0 : index
    %c0_1 = arith.constant 0 : index
    %0 = vector.load %arg1[%c0, %c0_0, %c0_1] : memref<1x16x1xf32, #tpu.memory_space<vmem>>, vector<1x16x1xf32>
    %1 = vector.shape_cast %0 : vector<1x16x1xf32> to vector<16x1xf32>
    %c0_2 = arith.constant 0 : index
    %c0_3 = arith.constant 0 : index
    %2 = vector.load %arg2[%c0_2, %c0_3] : memref<240x64xf32, #tpu.memory_space<vmem>>, vector<1x16xf32>
    %3 = vector.broadcast %1 : vector<16x1xf32> to vector<16x16xf32>
    %4 = vector.broadcast %2 : vector<1x16xf32> to vector<16x16xf32>
    %5 = arith.mulf %3, %4 : vector<16x16xf32>
    %c8 = arith.constant 8 : index
    %c0_4 = arith.constant 0 : index
    %6 = vector.load %arg2[%c8, %c0_4] : memref<240x64xf32, #tpu.memory_space<vmem>>, vector<16x16xf32>
    %7 = arith.addf %5, %6 : vector<16x16xf32>
    %cst = arith.constant dense<0.000000e+00> : vector<16x16xf32>
    %8 = tpu.matmul %7, %7, %cst {dimension_numbers = #tpu.dot_dimension_numbers<[1], [1], [0], [0], [0, 0, 1, 0], [], []>} : vector<16x16xf32>, vector<16x16xf32>, vector<16x16xf32> -> vector<16x16xf32>
    %cst_5 = arith.constant 2.500000e-01 : f32
    %9 = vector.broadcast %cst_5 : f32 to vector<16x16xf32>
    %10 = arith.mulf %8, %9 : vector<16x16xf32>
    %c216 = arith.constant 216 : index
    %c0_6 = arith.constant 0 : index
    %11 = vector.load %arg2[%c216, %c0_6] : memref<240x64xf32, #tpu.memory_space<vmem>>, vector<16x16xf32>
    %12 = arith.addf %10, %11 : vector<16x16xf32>
    %cst_7 = arith.constant dense<0xFF800000> : vector<16xf32>
    %13 = vector.multi_reduction <maximumf>, %12, %cst_7 [1] : vector<16x16xf32> to vector<16xf32>
    %14 = vector.shape_cast %13 : vector<16xf32> to vector<16x1xf32>
    %15 = vector.broadcast %14 : vector<16x1xf32> to vector<16x16xf32>
    %16 = arith.subf %12, %15 : vector<16x16xf32>
    %17 = math.exp %16 : vector<16x16xf32>
    %cst_8 = arith.constant dense<0.000000e+00> : vector<16xf32>
    %18 = vector.multi_reduction <add>, %17, %cst_8 [1] : vector<16x16xf32> to vector<16xf32>
    %19 = vector.shape_cast %18 : vector<16xf32> to vector<16x1xf32>
    %20 = vector.broadcast %19 : vector<16x1xf32> to vector<16x16xf32>
    %21 = arith.divf %17, %20 : vector<16x16xf32>
    %cst_9 = arith.constant dense<0.000000e+00> : vector<16x16xf32>
    %22 = tpu.matmul %21, %7, %cst_9 {dimension_numbers = #tpu.dot_dimension_numbers<[1], [0], [0], [1], [0, 0, 1, 1], [], []>} : vector<16x16xf32>, vector<16x16xf32>, vector<16x16xf32> -> vector<16x16xf32>
    %23 = arith.addf %22, %7 : vector<16x16xf32>
    %c24 = arith.constant 24 : index
    %c0_10 = arith.constant 0 : index
    %24 = vector.load %arg2[%c24, %c0_10] : memref<240x64xf32, #tpu.memory_space<vmem>>, vector<2x16xf32>
    %cst_11 = arith.constant dense<0.000000e+00> : vector<16xf32>
    %25 = vector.multi_reduction <add>, %23, %cst_11 [1] : vector<16x16xf32> to vector<16xf32>
    %26 = vector.shape_cast %25 : vector<16xf32> to vector<16x1xf32>
    %cst_12 = arith.constant 1.600000e+01 : f32
    %27 = vector.broadcast %cst_12 : f32 to vector<16x1xf32>
    %28 = arith.divf %26, %27 : vector<16x1xf32>
    %29 = vector.broadcast %28 : vector<16x1xf32> to vector<16x16xf32>
    %30 = arith.subf %23, %29 : vector<16x16xf32>
    %31 = arith.mulf %30, %30 : vector<16x16xf32>
    %cst_13 = arith.constant dense<0.000000e+00> : vector<16xf32>
    %32 = vector.multi_reduction <add>, %31, %cst_13 [1] : vector<16x16xf32> to vector<16xf32>
    %33 = vector.shape_cast %32 : vector<16xf32> to vector<16x1xf32>
    %cst_14 = arith.constant 1.600000e+01 : f32
    %34 = vector.broadcast %cst_14 : f32 to vector<16x1xf32>
    %35 = arith.divf %33, %34 : vector<16x1xf32>
    %36 = vector.broadcast %28 : vector<16x1xf32> to vector<16x16xf32>
    %37 = arith.subf %23, %36 : vector<16x16xf32>
    %cst_15 = arith.constant 9.99999974E-6 : f32
    %38 = vector.broadcast %cst_15 : f32 to vector<16x1xf32>
    %39 = arith.addf %35, %38 : vector<16x1xf32>
    %40 = math.rsqrt %39 : vector<16x1xf32>
    %41 = vector.broadcast %40 : vector<16x1xf32> to vector<16x16xf32>
    %42 = arith.mulf %37, %41 : vector<16x16xf32>
    %43 = vector.extract_strided_slice %24 {offsets = [0, 0], sizes = [1, 16], strides = [1, 1]} : vector<2x16xf32> to vector<1x16xf32>
    %44 = vector.broadcast %43 : vector<1x16xf32> to vector<16x16xf32>
    %45 = arith.mulf %42, %44 : vector<16x16xf32>
    %46 = vector.extract_strided_slice %24 {offsets = [1, 0], sizes = [1, 16], strides = [1, 1]} : vector<2x16xf32> to vector<1x16xf32>
    %47 = vector.broadcast %46 : vector<1x16xf32> to vector<16x16xf32>
    %48 = arith.addf %45, %47 : vector<16x16xf32>
    %c40 = arith.constant 40 : index
    %c0_16 = arith.constant 0 : index
    %49 = vector.load %arg2[%c40, %c0_16] : memref<240x64xf32, #tpu.memory_space<vmem>>, vector<16x64xf32>
    %cst_17 = arith.constant dense<0.000000e+00> : vector<16x64xf32>
    %50 = tpu.matmul %48, %49, %cst_17 {dimension_numbers = #tpu.dot_dimension_numbers<[1], [0], [0], [1], [0, 0, 1, 1], [], []>} : vector<16x16xf32>, vector<16x64xf32>, vector<16x64xf32> -> vector<16x64xf32>
    %c56 = arith.constant 56 : index
    %c0_18 = arith.constant 0 : index
    %51 = vector.load %arg2[%c56, %c0_18] : memref<240x64xf32, #tpu.memory_space<vmem>>, vector<1x64xf32>
    %52 = vector.broadcast %51 : vector<1x64xf32> to vector<16x64xf32>
    %53 = arith.addf %50, %52 : vector<16x64xf32>
    %cst_19 = arith.constant 0.000000e+00 : f32
    %54 = vector.broadcast %cst_19 : f32 to vector<16x64xf32>
    %55 = arith.maximumf %53, %54 : vector<16x64xf32>
    %c64 = arith.constant 64 : index
    %c0_20 = arith.constant 0 : index
    %56 = vector.load %arg2[%c64, %c0_20] : memref<240x64xf32, #tpu.memory_space<vmem>>, vector<64x16xf32>
    %cst_21 = arith.constant dense<0.000000e+00> : vector<16x16xf32>
    %57 = tpu.matmul %55, %56, %cst_21 {dimension_numbers = #tpu.dot_dimension_numbers<[1], [0], [0], [1], [0, 0, 1, 1], [], []>} : vector<16x64xf32>, vector<64x16xf32>, vector<16x16xf32> -> vector<16x16xf32>
    %c128 = arith.constant 128 : index
    %c0_22 = arith.constant 0 : index
    %58 = vector.load %arg2[%c128, %c0_22] : memref<240x64xf32, #tpu.memory_space<vmem>>, vector<1x16xf32>
    %59 = vector.broadcast %58 : vector<1x16xf32> to vector<16x16xf32>
    %60 = arith.addf %57, %59 : vector<16x16xf32>
    %61 = arith.addf %60, %48 : vector<16x16xf32>
    %c32 = arith.constant 32 : index
    %c0_23 = arith.constant 0 : index
    %62 = vector.load %arg2[%c32, %c0_23] : memref<240x64xf32, #tpu.memory_space<vmem>>, vector<2x16xf32>
    %cst_24 = arith.constant dense<0.000000e+00> : vector<16xf32>
    %63 = vector.multi_reduction <add>, %61, %cst_24 [1] : vector<16x16xf32> to vector<16xf32>
    %64 = vector.shape_cast %63 : vector<16xf32> to vector<16x1xf32>
    %cst_25 = arith.constant 1.600000e+01 : f32
    %65 = vector.broadcast %cst_25 : f32 to vector<16x1xf32>
    %66 = arith.divf %64, %65 : vector<16x1xf32>
    %67 = vector.broadcast %66 : vector<16x1xf32> to vector<16x16xf32>
    %68 = arith.subf %61, %67 : vector<16x16xf32>
    %69 = arith.mulf %68, %68 : vector<16x16xf32>
    %cst_26 = arith.constant dense<0.000000e+00> : vector<16xf32>
    %70 = vector.multi_reduction <add>, %69, %cst_26 [1] : vector<16x16xf32> to vector<16xf32>
    %71 = vector.shape_cast %70 : vector<16xf32> to vector<16x1xf32>
    %cst_27 = arith.constant 1.600000e+01 : f32
    %72 = vector.broadcast %cst_27 : f32 to vector<16x1xf32>
    %73 = arith.divf %71, %72 : vector<16x1xf32>
    %74 = vector.broadcast %66 : vector<16x1xf32> to vector<16x16xf32>
    %75 = arith.subf %61, %74 : vector<16x16xf32>
    %cst_28 = arith.constant 9.99999974E-6 : f32
    %76 = vector.broadcast %cst_28 : f32 to vector<16x1xf32>
    %77 = arith.addf %73, %76 : vector<16x1xf32>
    %78 = math.rsqrt %77 : vector<16x1xf32>
    %79 = vector.broadcast %78 : vector<16x1xf32> to vector<16x16xf32>
    %80 = arith.mulf %75, %79 : vector<16x16xf32>
    %81 = vector.extract_strided_slice %62 {offsets = [0, 0], sizes = [1, 16], strides = [1, 1]} : vector<2x16xf32> to vector<1x16xf32>
    %82 = vector.broadcast %81 : vector<1x16xf32> to vector<16x16xf32>
    %83 = arith.mulf %80, %82 : vector<16x16xf32>
    %84 = vector.extract_strided_slice %62 {offsets = [1, 0], sizes = [1, 16], strides = [1, 1]} : vector<2x16xf32> to vector<1x16xf32>
    %85 = vector.broadcast %84 : vector<1x16xf32> to vector<16x16xf32>
    %86 = arith.addf %83, %85 : vector<16x16xf32>
    %c232 = arith.constant 232 : index
    %c0_29 = arith.constant 0 : index
    %87 = vector.load %arg2[%c232, %c0_29] : memref<240x64xf32, #tpu.memory_space<vmem>>, vector<4x16xf32>
    %cst_30 = arith.constant dense<0.000000e+00> : vector<4x16xf32>
    %88 = tpu.matmul %87, %86, %cst_30 {dimension_numbers = #tpu.dot_dimension_numbers<[1], [0], [0], [1], [0, 0, 1, 1], [], []>} : vector<4x16xf32>, vector<16x16xf32>, vector<4x16xf32> -> vector<4x16xf32>
    %89 = vector.extract_strided_slice %88 {offsets = [0, 0], sizes = [2, 16], strides = [1, 1]} : vector<4x16xf32> to vector<2x16xf32>
    %90 = vector.extract_strided_slice %88 {offsets = [2, 0], sizes = [2, 16], strides = [1, 1]} : vector<4x16xf32> to vector<2x16xf32>
    %91 = arith.subf %89, %90 : vector<2x16xf32>
    %c136 = arith.constant 136 : index
    %c0_31 = arith.constant 0 : index
    %92 = vector.load %arg2[%c136, %c0_31] : memref<240x64xf32, #tpu.memory_space<vmem>>, vector<16x48xf32>
    %cst_32 = arith.constant dense<0.000000e+00> : vector<2x48xf32>
    %93 = tpu.matmul %91, %92, %cst_32 {dimension_numbers = #tpu.dot_dimension_numbers<[1], [0], [0], [1], [0, 0, 1, 1], [], []>} : vector<2x16xf32>, vector<16x48xf32>, vector<2x48xf32> -> vector<2x48xf32>
    %c152 = arith.constant 152 : index
    %c0_33 = arith.constant 0 : index
    %94 = vector.load %arg2[%c152, %c0_33] : memref<240x64xf32, #tpu.memory_space<vmem>>, vector<1x48xf32>
    %95 = vector.broadcast %94 : vector<1x48xf32> to vector<2x48xf32>
    %96 = arith.addf %93, %95 : vector<2x48xf32>
    %97 = vector.extract_strided_slice %96 {offsets = [0, 0], sizes = [2, 16], strides = [1, 1]} : vector<2x48xf32> to vector<2x16xf32>
    %98 = vector.extract_strided_slice %96 {offsets = [0, 16], sizes = [2, 16], strides = [1, 1]} : vector<2x48xf32> to vector<2x16xf32>
    %99 = vector.extract_strided_slice %96 {offsets = [0, 32], sizes = [2, 16], strides = [1, 1]} : vector<2x48xf32> to vector<2x16xf32>
    %c160 = arith.constant 160 : index
    %c0_34 = arith.constant 0 : index
    %100 = vector.load %arg2[%c160, %c0_34] : memref<240x64xf32, #tpu.memory_space<vmem>>, vector<16x8xf32>
    %101 = vector.extract_strided_slice %97 {offsets = [0, 0], sizes = [1, 16], strides = [1, 1]} : vector<2x16xf32> to vector<1x16xf32>
    %102 = vector.extract_strided_slice %98 {offsets = [0, 0], sizes = [1, 16], strides = [1, 1]} : vector<2x16xf32> to vector<1x16xf32>
    %103 = arith.mulf %101, %102 : vector<1x16xf32>
    %104 = vector.extract_strided_slice %97 {offsets = [0, 0], sizes = [1, 16], strides = [1, 1]} : vector<2x16xf32> to vector<1x16xf32>
    %105 = vector.extract_strided_slice %98 {offsets = [1, 0], sizes = [1, 16], strides = [1, 1]} : vector<2x16xf32> to vector<1x16xf32>
    %106 = arith.mulf %104, %105 : vector<1x16xf32>
    %107 = vector.extract_strided_slice %97 {offsets = [1, 0], sizes = [1, 16], strides = [1, 1]} : vector<2x16xf32> to vector<1x16xf32>
    %108 = vector.extract_strided_slice %98 {offsets = [0, 0], sizes = [1, 16], strides = [1, 1]} : vector<2x16xf32> to vector<1x16xf32>
    %109 = arith.mulf %107, %108 : vector<1x16xf32>
    %110 = vector.extract_strided_slice %97 {offsets = [1, 0], sizes = [1, 16], strides = [1, 1]} : vector<2x16xf32> to vector<1x16xf32>
    %111 = vector.extract_strided_slice %98 {offsets = [1, 0], sizes = [1, 16], strides = [1, 1]} : vector<2x16xf32> to vector<1x16xf32>
    %112 = arith.mulf %110, %111 : vector<1x16xf32>
    %113 = tpu.concatenate %103, %106, %109, %112 in 0 : vector<1x16xf32>, vector<1x16xf32>, vector<1x16xf32>, vector<1x16xf32> -> vector<4x16xf32>
    %cst_35 = arith.constant dense<0.000000e+00> : vector<4x8xf32>
    %114 = tpu.matmul %113, %100, %cst_35 {dimension_numbers = #tpu.dot_dimension_numbers<[1], [0], [0], [1], [0, 0, 1, 1], [], []>} : vector<4x16xf32>, vector<16x8xf32>, vector<4x8xf32> -> vector<4x8xf32>
    %115 = vector.extract_strided_slice %114 {offsets = [0, 0], sizes = [1, 8], strides = [1, 1]} : vector<4x8xf32> to vector<1x8xf32>
    %116 = vector.extract_strided_slice %114 {offsets = [1, 0], sizes = [1, 8], strides = [1, 1]} : vector<4x8xf32> to vector<1x8xf32>
    %117 = arith.maximumf %115, %116 : vector<1x8xf32>
    %118 = arith.subf %115, %117 : vector<1x8xf32>
    %119 = math.exp %118 : vector<1x8xf32>
    %120 = arith.subf %116, %117 : vector<1x8xf32>
    %121 = math.exp %120 : vector<1x8xf32>
    %122 = arith.addf %119, %121 : vector<1x8xf32>
    %123 = tpu.reciprocal %122 {approx = true} : vector<1x8xf32> -> vector<1x8xf32>
    %124 = arith.mulf %119, %123 : vector<1x8xf32>
    %125 = arith.mulf %121, %123 : vector<1x8xf32>
    %126 = vector.extract_strided_slice %114 {offsets = [2, 0], sizes = [1, 8], strides = [1, 1]} : vector<4x8xf32> to vector<1x8xf32>
    %127 = vector.extract_strided_slice %114 {offsets = [3, 0], sizes = [1, 8], strides = [1, 1]} : vector<4x8xf32> to vector<1x8xf32>
    %128 = arith.maximumf %126, %127 : vector<1x8xf32>
    %129 = arith.subf %126, %128 : vector<1x8xf32>
    %130 = math.exp %129 : vector<1x8xf32>
    %131 = arith.subf %127, %128 : vector<1x8xf32>
    %132 = math.exp %131 : vector<1x8xf32>
    %133 = arith.addf %130, %132 : vector<1x8xf32>
    %134 = tpu.reciprocal %133 {approx = true} : vector<1x8xf32> -> vector<1x8xf32>
    %135 = arith.mulf %130, %134 : vector<1x8xf32>
    %136 = arith.mulf %132, %134 : vector<1x8xf32>
    %137 = tpu.concatenate %124, %125, %135, %136 in 0 : vector<1x8xf32>, vector<1x8xf32>, vector<1x8xf32>, vector<1x8xf32> -> vector<4x8xf32>
    %cst_36 = arith.constant dense<0.000000e+00> : vector<4x16xf32>
    %138 = tpu.matmul %137, %100, %cst_36 {dimension_numbers = #tpu.dot_dimension_numbers<[1], [1], [0], [0], [0, 0, 1, 0], [], []>} : vector<4x8xf32>, vector<16x8xf32>, vector<4x16xf32> -> vector<4x16xf32>
    %139 = vector.extract_strided_slice %138 {offsets = [0, 0], sizes = [1, 16], strides = [1, 1]} : vector<4x16xf32> to vector<1x16xf32>
    %140 = vector.extract_strided_slice %99 {offsets = [0, 0], sizes = [1, 16], strides = [1, 1]} : vector<2x16xf32> to vector<1x16xf32>
    %141 = arith.mulf %139, %140 : vector<1x16xf32>
    %142 = vector.extract_strided_slice %138 {offsets = [1, 0], sizes = [1, 16], strides = [1, 1]} : vector<4x16xf32> to vector<1x16xf32>
    %143 = vector.extract_strided_slice %99 {offsets = [1, 0], sizes = [1, 16], strides = [1, 1]} : vector<2x16xf32> to vector<1x16xf32>
    %144 = arith.mulf %142, %143 : vector<1x16xf32>
    %145 = arith.addf %141, %144 : vector<1x16xf32>
    %146 = vector.extract_strided_slice %138 {offsets = [2, 0], sizes = [1, 16], strides = [1, 1]} : vector<4x16xf32> to vector<1x16xf32>
    %147 = vector.extract_strided_slice %99 {offsets = [0, 0], sizes = [1, 16], strides = [1, 1]} : vector<2x16xf32> to vector<1x16xf32>
    %148 = arith.mulf %146, %147 : vector<1x16xf32>
    %149 = vector.extract_strided_slice %138 {offsets = [3, 0], sizes = [1, 16], strides = [1, 1]} : vector<4x16xf32> to vector<1x16xf32>
    %150 = vector.extract_strided_slice %99 {offsets = [1, 0], sizes = [1, 16], strides = [1, 1]} : vector<2x16xf32> to vector<1x16xf32>
    %151 = arith.mulf %149, %150 : vector<1x16xf32>
    %152 = arith.addf %148, %151 : vector<1x16xf32>
    %153 = tpu.concatenate %145, %152 in 0 : vector<1x16xf32>, vector<1x16xf32> -> vector<2x16xf32>
    %c176 = arith.constant 176 : index
    %c0_37 = arith.constant 0 : index
    %154 = vector.load %arg2[%c176, %c0_37] : memref<240x64xf32, #tpu.memory_space<vmem>>, vector<16x1xf32>
    %cst_38 = arith.constant dense<0.000000e+00> : vector<2x1xf32>
    %155 = tpu.matmul %153, %154, %cst_38 {dimension_numbers = #tpu.dot_dimension_numbers<[1], [0], [0], [1], [0, 0, 1, 1], [], []>} : vector<2x16xf32>, vector<16x1xf32>, vector<2x1xf32> -> vector<2x1xf32>
    %c192 = arith.constant 192 : index
    %c0_39 = arith.constant 0 : index
    %156 = vector.load %arg2[%c192, %c0_39] : memref<240x64xf32, #tpu.memory_space<vmem>>, vector<16x1xf32>
    %cst_40 = arith.constant dense<0.000000e+00> : vector<2x1xf32>
    %157 = tpu.matmul %90, %156, %cst_40 {dimension_numbers = #tpu.dot_dimension_numbers<[1], [0], [0], [1], [0, 0, 1, 1], [], []>} : vector<2x16xf32>, vector<16x1xf32>, vector<2x1xf32> -> vector<2x1xf32>
    %158 = arith.addf %155, %157 : vector<2x1xf32>
    %c208 = arith.constant 208 : index
    %c0_41 = arith.constant 0 : index
    %159 = vector.load %arg2[%c208, %c0_41] : memref<240x64xf32, #tpu.memory_space<vmem>>, vector<1x1xf32>
    %160 = vector.broadcast %159 : vector<1x1xf32> to vector<2x1xf32>
    %161 = arith.addf %158, %160 : vector<2x1xf32>
    %c0_42 = arith.constant 0 : index
    %c0_43 = arith.constant 0 : index
    %c0_44 = arith.constant 0 : index
    %162 = vector.load %arg3[%c0_42, %c0_43, %c0_44] : memref<1x2x1xf32, #tpu.memory_space<vmem>>, vector<1x2x1xf32>
    %163 = vector.shape_cast %162 : vector<1x2x1xf32> to vector<2x1xf32>
    %164 = vector.shape_cast %161 : vector<2x1xf32> to vector<1x2x1xf32>
    tpu.vector_store %arg3[%c0_42, %c0_43, %c0_44], %164 {strides = array<i32>} : memref<1x2x1xf32, #tpu.memory_space<vmem>>, vector<1x2x1xf32>,
    return
  }
  func.func @transform_0(%arg0: i32) -> (i32, i32, i32) {
    %c0_i32 = arith.constant 0 : i32
    %c0_i32_0 = arith.constant 0 : i32
    %c0_i32_1 = arith.constant 0 : i32
    return %arg0, %c0_i32, %c0_i32_0 : i32, i32, i32
  }
  func.func @transform_1(%arg0: i32) -> (i32, i32) {
    %c0_i32 = arith.constant 0 : i32
    %c0_i32_0 = arith.constant 0 : i32
    %c0_i32_1 = arith.constant 0 : i32
    return %c0_i32, %c0_i32_0 : i32, i32
  }
  func.func @transform_2(%arg0: i32) -> (i32, i32, i32) {
    %c0_i32 = arith.constant 0 : i32
    %c0_i32_0 = arith.constant 0 : i32
    %c0_i32_1 = arith.constant 0 : i32
    return %arg0, %c0_i32, %c0_i32_0 : i32, i32, i32
  }
}

</mosaic_0001>

<llo_original>
// kernel: tpu_custom_call.1
$region0: #{tpu_custom_call.1}
  #allocation0 [shape = 'u32[]', space=smem, size = 0x4, offset = 0x4, fixed_abs, tag = 'smem constant byte address 0x4 - core index']
  #allocation1 [shape = 'u32[144,128]{1,0:T(1,128)}', space=vmem, size = 0x12000, scoped, tag = 'internal scratch']
  %s0 = inlined_call_operand.vmem [shape: f32[1,16,1], index: 0, kind: input, shape index: {}]
  %s1 = inlined_call_operand.vmem [shape: f32[240,64], index: 1, kind: input, shape index: {}]
  %s2 = inlined_call_operand.vmem [shape: f32[1,2,1], index: 2, kind: output, shape index: {}]
  %s3 = sld [smem:[#allocation0]]
  $region18: #{tpu_custom_call.1} parent=0
    _
  %s5 = ssub.s32 1, %s3
  %s6 = scalar_select 0, %s5, %s3
  // Predicated region
  $region2: #{tpu_custom_call.1} parent=0 // pred_check
    _
  $region3: #{tpu_custom_call.1} parent=0 // pred_check_branch
    %8 = sbr.rel (0) target = $region5
  $region4: #{tpu_custom_call.1} parent=0 // pred_region
    _
  $region5: #{tpu_custom_call.1} parent=0 // pred_fallthru
    _
  // Predicated region
  $region6: #{tpu_custom_call.1} parent=0 // pred_check
    _
  $region7: #{tpu_custom_call.1} parent=0 // pred_check_branch
    %10 = sbr.rel (0) target = $region9
  $region8: #{tpu_custom_call.1} parent=0 // pred_region
    _
  $region9: #{tpu_custom_call.1} parent=0 // pred_fallthru
    _
  %v11 = vld [vmem:[%s0] sm:$0xff]
  %v12 = vld [vmem:[%s0 + $0x8] sm:$0xff]
  %v13 = vld [vmem:[%s1] sm:$0x1]
  %15 = vset.pattern.permute.xlu0 0
  %16 = vperm.xlu0 %15, %v11
  %v17 = vpop.permute.xlu0 %16
  %20 = vset.pattern.permute.xlu0 0
  %21 = vperm.xlu0 %20, %v12
  %v22 = vpop.permute.xlu0 %21
  %v24 = vlaneseq
  %v25 = vshrl.u32 %v24, 7
  %v26 = vsub.s32 0, %v25
  %v27 = vrot.slane %v13, %v26
  %v28 = vmul.f32 %v17, %v27
  %v29 = vmul.f32 %v22, %v27
  %v30 = vld [vmem:[%s1 + $0x8] sm:$0xff]
  %v31 = vld [vmem:[%s1 + $0x10] sm:$0xff]
  %v32 = vadd.f32 %v28, %v30
  %v33 = vadd.f32 %v29, %v31
  %vm34 = vcmask 130048
  %v36 = vsel %vm34, %v32, 0
  %v39 = vsel %vm34, %v33, 0
  %41 = vmatprep.subr.mxu0 0.0
  %42 = vmatpush1.xpose.msra.mxu0 0.0
  %43 = vmatprep.subr.mxu0 0.0
  %44 = vmatpush1.xpose.msra.mxu0 0.0
  %45 = vmatprep.subr.mxu0 0.0
  %46 = vmatpush1.xpose.msra.mxu0 0.0
  %47 = vmatprep.subr.mxu0 0.0
  %48 = vmatpush1.xpose.msra.mxu0 0.0
  %49 = vmatprep.subr.mxu0 0.0
  %50 = vmatpush1.xpose.msra.mxu0 0.0
  %51 = vmatprep.subr.mxu0 0.0
  %52 = vmatpush1.xpose.msra.mxu0 0.0
  %53 = vmatprep.subr.mxu0 0.0
  %54 = vmatpush1.xpose.msra.mxu0 0.0
  %55 = vmatprep.subr.mxu0 0.0
  %56 = vmatpush1.xpose.msra.mxu0 0.0
  %57 = vmatprep.subr.mxu0 0.0
  %58 = vmatpush1.xpose.msra.mxu0 0.0
  %59 = vmatprep.subr.mxu0 0.0
  %60 = vmatpush1.xpose.msra.mxu0 0.0
  %61 = vmatprep.subr.mxu0 0.0
  %62 = vmatpush1.xpose.msra.mxu0 0.0
  %63 = vmatprep.subr.mxu0 0.0
  %64 = vmatpush1.xpose.msra.mxu0 0.0
  %65 = vmatprep.subr.mxu0 0.0
  %66 = vmatpush1.xpose.msra.mxu0 0.0
  %67 = vmatprep.subr.mxu0 0.0
  %68 = vmatpush1.xpose.msra.mxu0 0.0
  %69 = vmatprep.subr.mxu0 0.0
  %70 = vmatpush1.xpose.msra.mxu0 %v39
  %71 = vmatprep.subr.mxu0 0.0
  %72 = vmatpush1.xpose.msra.mxu0 %v36
  %73 = vmatprep.subr.mxu0 0.0
  %74 = vmatpush2.xpose.msra.mxu0 0.0
  %75 = vmatprep.subr.mxu0 0.0
  %76 = vmatpush2.xpose.msra.mxu0 0.0
  %77 = vmatprep.subr.mxu0 0.0
  %78 = vmatpush2.xpose.msra.mxu0 0.0
  %79 = vmatprep.subr.mxu0 0.0
  %80 = vmatpush2.xpose.msra.mxu0 0.0
  %81 = vmatprep.subr.mxu0 0.0
  %82 = vmatpush2.xpose.msra.mxu0 0.0
  %83 = vmatprep.subr.mxu0 0.0
  %84 = vmatpush2.xpose.msra.mxu0 0.0
  %85 = vmatprep.subr.mxu0 0.0
  %86 = vmatpush2.xpose.msra.mxu0 0.0
  %87 = vmatprep.subr.mxu0 0.0
  %88 = vmatpush2.xpose.msra.mxu0 0.0
  %89 = vmatprep.subr.mxu0 0.0
  %90 = vmatpush2.xpose.msra.mxu0 0.0
  %91 = vmatprep.subr.mxu0 0.0
  %92 = vmatpush2.xpose.msra.mxu0 0.0
  %93 = vmatprep.subr.mxu0 0.0
  %94 = vmatpush2.xpose.msra.mxu0 0.0
  %95 = vmatprep.subr.mxu0 0.0
  %96 = vmatpush2.xpose.msra.mxu0 0.0
  %97 = vmatprep.subr.mxu0 0.0
  %98 = vmatpush2.xpose.msra.mxu0 0.0
  %99 = vmatprep.subr.mxu0 0.0
  %100 = vmatpush2.xpose.msra.mxu0 0.0
  %101 = vmatprep.subr.mxu0 0.0
  %102 = vmatpush2.xpose.msra.mxu0 0.0
  %103 = vmatprep.subr.mxu0 0.0
  %104 = vmatpush2.xpose.msra.mxu0 0.0
  %105 = vmatprep.mubr.f32.mxu0 0.0
  %106 = vmatmul.mubr.f32.gmra.mxu0 %v36
  %v107 = vpop.f32.mrf.mxu0
  %v108 = vadd.f32 0.0, %v107
  %v109 = vpop.f32.mrf.mxu0
  %110 = vmatprep.mubr.f32.mxu0 0.0
  %111 = vmatmul.mubr.f32.gmra.mxu0 %v39
  %v112 = vpop.f32.mrf.mxu0
  %v113 = vadd.f32 0.0, %v112
  %v114 = vpop.f32.mrf.mxu0
  %115 = vdwg.mxu0
  %v116 = vmul.f32 %v108, 0.25
  %v117 = vmul.f32 %v113, 0.25
  %v118 = vld [vmem:[%s1 + $0xd8] sm:$0xff]
  %v119 = vld [vmem:[%s1 + $0xe0] sm:$0xff]
  %v120 = vadd.f32 %v116, %v118
  %v121 = vadd.f32 %v117, %v119
  %v122 = vsel %vm34, %v120, -inf
  %123 = vmax.xlane.f32.xlu0 %v122
  %v124 = vpop.xlane.xlu0 %123
  %v125 = vsel %vm34, %v121, -inf
  %126 = vmax.xlane.f32.xlu0 %v125
  %v127 = vpop.xlane.xlu0 %126
  %v128 = vsub.f32 %v120, %v124
  %v129 = vsub.f32 %v121, %v127
  %v130 = vmul.f32 %v128, 1.442695
  %v131 = vpow.pop %v130
  %v132 = vmul.f32 %v129, 1.442695
  %v133 = vpow.pop %v132
  %v134 = vsel %vm34, %v131, 0.0
  %135 = vadd.xlane.f32.xlu0 %v134
  %v136 = vpop.xlane.xlu0 %135
  %v137 = vsel %vm34, %v133, 0.0
  %138 = vadd.xlane.f32.xlu0 %v137
  %v139 = vpop.xlane.xlu0 %138
  %v140 = vrcp.pop %v136
  %v141 = vmul.f32 %v131, %v140
  %v142 = vrcp.pop %v139
  %v143 = vmul.f32 %v133, %v142
  %v145 = vsel %vm34, %v141, 0
  %v148 = vsel %vm34, %v143, 0
  %150 = vmatprep.subr.mxu0 0.0
  %151 = vmatpush1.msra.mxu0 0.0
  %152 = vmatprep.subr.mxu0 0.0
  %153 = vmatpush1.msra.mxu0 0.0
  %154 = vmatprep.subr.mxu0 0.0
  %155 = vmatpush1.msra.mxu0 0.0
  %156 = vmatprep.subr.mxu0 0.0
  %157 = vmatpush1.msra.mxu0 0.0
  %158 = vmatprep.subr.mxu0 0.0
  %159 = vmatpush1.msra.mxu0 0.0
  %160 = vmatprep.subr.mxu0 0.0
  %161 = vmatpush1.msra.mxu0 0.0
  %162 = vmatprep.subr.mxu0 0.0
  %163 = vmatpush1.msra.mxu0 0.0
  %164 = vmatprep.subr.mxu0 0.0
  %165 = vmatpush1.msra.mxu0 0.0
  %166 = vmatprep.subr.mxu0 0.0
  %167 = vmatpush1.msra.mxu0 0.0
  %168 = vmatprep.subr.mxu0 0.0
  %169 = vmatpush1.msra.mxu0 0.0
  %170 = vmatprep.subr.mxu0 0.0
  %171 = vmatpush1.msra.mxu0 0.0
  %172 = vmatprep.subr.mxu0 0.0
  %173 = vmatpush1.msra.mxu0 0.0
  %174 = vmatprep.subr.mxu0 0.0
  %175 = vmatpush1.msra.mxu0 0.0
  %176 = vmatprep.subr.mxu0 0.0
  %177 = vmatpush1.msra.mxu0 0.0
  %178 = vmatprep.subr.mxu0 0.0
  %179 = vmatpush1.msra.mxu0 %v33
  %180 = vmatprep.subr.mxu0 0.0
  %181 = vmatpush1.msra.mxu0 %v32
  %182 = vmatprep.subr.mxu0 0.0
  %183 = vmatpush2.msra.mxu0 0.0
  %184 = vmatprep.subr.mxu0 0.0
  %185 = vmatpush2.msra.mxu0 0.0
  %186 = vmatprep.subr.mxu0 0.0
  %187 = vmatpush2.msra.mxu0 0.0
  %188 = vmatprep.subr.mxu0 0.0
  %189 = vmatpush2.msra.mxu0 0.0
  %190 = vmatprep.subr.mxu0 0.0
  %191 = vmatpush2.msra.mxu0 0.0
  %192 = vmatprep.subr.mxu0 0.0
  %193 = vmatpush2.msra.mxu0 0.0
  %194 = vmatprep.subr.mxu0 0.0
  %195 = vmatpush2.msra.mxu0 0.0
  %196 = vmatprep.subr.mxu0 0.0
  %197 = vmatpush2.msra.mxu0 0.0
  %198 = vmatprep.subr.mxu0 0.0
  %199 = vmatpush2.msra.mxu0 0.0
  %200 = vmatprep.subr.mxu0 0.0
  %201 = vmatpush2.msra.mxu0 0.0
  %202 = vmatprep.subr.mxu0 0.0
  %203 = vmatpush2.msra.mxu0 0.0
  %204 = vmatprep.subr.mxu0 0.0
  %205 = vmatpush2.msra.mxu0 0.0
  %206 = vmatprep.subr.mxu0 0.0
  %207 = vmatpush2.msra.mxu0 0.0
  %208 = vmatprep.subr.mxu0 0.0
  %209 = vmatpush2.msra.mxu0 0.0
  %210 = vmatprep.subr.mxu0 0.0
  %211 = vmatpush2.msra.mxu0 0.0
  %212 = vmatprep.subr.mxu0 0.0
  %213 = vmatpush2.msra.mxu0 0.0
  %214 = vmatprep.mubr.f32.mxu0 0.0
  %215 = vmatmul.mubr.f32.gmra.mxu0 %v145
  %v216 = vpop.f32.mrf.mxu0
  %v217 = vadd.f32 %v32, %v216
  %v218 = vpop.f32.mrf.mxu0
  %219 = vmatprep.mubr.f32.mxu0 0.0
  %220 = vmatmul.mubr.f32.gmra.mxu0 %v148
  %v221 = vpop.f32.mrf.mxu0
  %v222 = vadd.f32 %v33, %v221
  %v223 = vpop.f32.mrf.mxu0
  %224 = vdwg.mxu0
  %v225 = vld [vmem:[%s1 + $0x18] sm:$0x3]
  %v226 = vsel %vm34, %v217, 0.0
  %227 = vadd.xlane.f32.xlu0 %v226
  %v228 = vpop.xlane.xlu0 %227
  %v229 = vsel %vm34, %v222, 0.0
  %230 = vadd.xlane.f32.xlu0 %v229
  %v231 = vpop.xlane.xlu0 %230
  %v232 = vrcp.pop 16.0
  %v233 = vmul.f32 %v228, %v232
  %v234 = vmul.f32 %v231, %v232
  %v235 = vsub.f32 %v217, %v233
  %v236 = vsub.f32 %v222, %v234
  %v237 = vmul.f32 %v235, %v235
  %v238 = vmul.f32 %v236, %v236
  %v239 = vsel %vm34, %v237, 0.0
  %240 = vadd.xlane.f32.xlu0 %v239
  %v241 = vpop.xlane.xlu0 %240
  %v242 = vsel %vm34, %v238, 0.0
  %243 = vadd.xlane.f32.xlu0 %v242
  %v244 = vpop.xlane.xlu0 %243
  %v245 = vmul.f32 %v241, %v232
  %v246 = vmul.f32 %v244, %v232
  %v247 = vadd.f32 %v245, 1e-05
  %v248 = vadd.f32 %v246, 1e-05
  %v249 = vrsqrt.pop %v247
  %v250 = vrsqrt.pop %v248
  %v251 = vmul.f32 %v235, %v249
  %v252 = vmul.f32 %v236, %v250
  %v253 = vlaneseq
  %v254 = vshrl.u32 %v253, 7
  %v255 = vsub.s32 0, %v254
  %v256 = vrot.slane %v225, %v255
  %v257 = vmul.f32 %v251, %v256
  %v258 = vmul.f32 %v252, %v256
  %v259 = vlaneseq
  %v260 = vshrl.u32 %v259, 7
  %v261 = vsub.s32 1, %v260
  %v262 = vrot.slane %v225, %v261
  %v263 = vadd.f32 %v257, %v262
  %v264 = vadd.f32 %v258, %v262
  %v265 = vld [vmem:[%s1 + $0x28] sm:$0xff]
  %v266 = vld [vmem:[%s1 + $0x30] sm:$0xff]
  %v267 = vld [vmem:[%s1 + $0x38] sm:$0x1]
  %v268 = vlaneseq
  %v269 = vshrl.u32 %v268, 7
  %v270 = vsub.s32 0, %v269
  %v271 = vrot.slane %v267, %v270
  %v273 = vsel %vm34, %v263, 0
  %v276 = vsel %vm34, %v264, 0
  %278 = vmatprep.subr.mxu0 0.0
  %279 = vmatpush1.msra.mxu0 0.0
  %280 = vmatprep.subr.mxu0 0.0
  %281 = vmatpush1.msra.mxu0 0.0
  %282 = vmatprep.subr.mxu0 0.0
  %283 = vmatpush1.msra.mxu0 0.0
  %284 = vmatprep.subr.mxu0 0.0
  %285 = vmatpush1.msra.mxu0 0.0
  %286 = vmatprep.subr.mxu0 0.0
  %287 = vmatpush1.msra.mxu0 0.0
  %288 = vmatprep.subr.mxu0 0.0
  %289 = vmatpush1.msra.mxu0 0.0
  %290 = vmatprep.subr.mxu0 0.0
  %291 = vmatpush1.msra.mxu0 0.0
  %292 = vmatprep.subr.mxu0 0.0
  %293 = vmatpush1.msra.mxu0 0.0
  %294 = vmatprep.subr.mxu0 0.0
  %295 = vmatpush1.msra.mxu0 0.0
  %296 = vmatprep.subr.mxu0 0.0
  %297 = vmatpush1.msra.mxu0 0.0
  %298 = vmatprep.subr.mxu0 0.0
  %299 = vmatpush1.msra.mxu0 0.0
  %300 = vmatprep.subr.mxu0 0.0
  %301 = vmatpush1.msra.mxu0 0.0
  %302 = vmatprep.subr.mxu0 0.0
  %303 = vmatpush1.msra.mxu0 0.0
  %304 = vmatprep.subr.mxu0 0.0
  %305 = vmatpush1.msra.mxu0 0.0
  %306 = vmatprep.subr.mxu0 0.0
  %307 = vmatpush1.msra.mxu0 %v266
  %308 = vmatprep.subr.mxu0 0.0
  %309 = vmatpush1.msra.mxu0 %v265
  %310 = vmatprep.subr.mxu0 0.0
  %311 = vmatpush2.msra.mxu0 0.0
  %312 = vmatprep.subr.mxu0 0.0
  %313 = vmatpush2.msra.mxu0 0.0
  %314 = vmatprep.subr.mxu0 0.0
  %315 = vmatpush2.msra.mxu0 0.0
  %316 = vmatprep.subr.mxu0 0.0
  %317 = vmatpush2.msra.mxu0 0.0
  %318 = vmatprep.subr.mxu0 0.0
  %319 = vmatpush2.msra.mxu0 0.0
  %320 = vmatprep.subr.mxu0 0.0
  %321 = vmatpush2.msra.mxu0 0.0
  %322 = vmatprep.subr.mxu0 0.0
  %323 = vmatpush2.msra.mxu0 0.0
  %324 = vmatprep.subr.mxu0 0.0
  %325 = vmatpush2.msra.mxu0 0.0
  %326 = vmatprep.subr.mxu0 0.0
  %327 = vmatpush2.msra.mxu0 0.0
  %328 = vmatprep.subr.mxu0 0.0
  %329 = vmatpush2.msra.mxu0 0.0
  %330 = vmatprep.subr.mxu0 0.0
  %331 = vmatpush2.msra.mxu0 0.0
  %332 = vmatprep.subr.mxu0 0.0
  %333 = vmatpush2.msra.mxu0 0.0
  %334 = vmatprep.subr.mxu0 0.0
  %335 = vmatpush2.msra.mxu0 0.0
  %336 = vmatprep.subr.mxu0 0.0
  %337 = vmatpush2.msra.mxu0 0.0
  %338 = vmatprep.subr.mxu0 0.0
  %339 = vmatpush2.msra.mxu0 0.0
  %340 = vmatprep.subr.mxu0 0.0
  %341 = vmatpush2.msra.mxu0 0.0
  %342 = vmatprep.mubr.f32.mxu0 0.0
  %343 = vmatmul.mubr.f32.gmra.mxu0 %v273
  %v344 = vpop.f32.mrf.mxu0
  %v345 = vadd.f32 %v271, %v344
  %v346 = vpop.f32.mrf.mxu0
  %347 = vmatprep.mubr.f32.mxu0 0.0
  %348 = vmatmul.mubr.f32.gmra.mxu0 %v276
  %v349 = vpop.f32.mrf.mxu0
  %v350 = vadd.f32 %v271, %v349
  %v351 = vpop.f32.mrf.mxu0
  %352 = vdwg.mxu0
  %v353 = vmax.f32 %v345, 0.0
  %v354 = vmax.f32 %v350, 0.0
  %v355 = vld [vmem:[%s1 + $0x40] sm:$0xff]
  %v356 = vld [vmem:[%s1 + $0x48] sm:$0xff]
  %v357 = vld [vmem:[%s1 + $0x50] sm:$0xff]
  %v358 = vld [vmem:[%s1 + $0x58] sm:$0xff]
  %v359 = vld [vmem:[%s1 + $0x60] sm:$0xff]
  %v360 = vld [vmem:[%s1 + $0x68] sm:$0xff]
  %v361 = vld [vmem:[%s1 + $0x70] sm:$0xff]
  %v362 = vld [vmem:[%s1 + $0x78] sm:$0xff]
  %v363 = vld [vmem:[%s1 + $0x80] sm:$0x1]
  %v364 = vlaneseq
  %v365 = vshrl.u32 %v364, 7
  %v366 = vsub.s32 0, %v365
  %v367 = vrot.slane %v363, %v366
  %vm368 = vcmask 523264
  %v370 = vsel %vm368, %v353, 0
  %v373 = vsel %vm368, %v354, 0
  %375 = vmatprep.subr.mxu0 0.0
  %376 = vmatpush1.msra.mxu0 0.0
  %377 = vmatprep.subr.mxu0 0.0
  %378 = vmatpush1.msra.mxu0 0.0
  %379 = vmatprep.subr.mxu0 0.0
  %380 = vmatpush1.msra.mxu0 0.0
  %381 = vmatprep.subr.mxu0 0.0
  %382 = vmatpush1.msra.mxu0 0.0
  %383 = vmatprep.subr.mxu0 0.0
  %384 = vmatpush1.msra.mxu0 0.0
  %385 = vmatprep.subr.mxu0 0.0
  %386 = vmatpush1.msra.mxu0 0.0
  %387 = vmatprep.subr.mxu0 0.0
  %388 = vmatpush1.msra.mxu0 0.0
  %389 = vmatprep.subr.mxu0 0.0
  %390 = vmatpush1.msra.mxu0 0.0
  %391 = vmatprep.subr.mxu0 0.0
  %392 = vmatpush1.msra.mxu0 %v362
  %393 = vmatprep.subr.mxu0 0.0
  %394 = vmatpush1.msra.mxu0 %v361
  %395 = vmatprep.subr.mxu0 0.0
  %396 = vmatpush1.msra.mxu0 %v360
  %397 = vmatprep.subr.mxu0 0.0
  %398 = vmatpush1.msra.mxu0 %v359
  %399 = vmatprep.subr.mxu0 0.0
  %400 = vmatpush1.msra.mxu0 %v358
  %401 = vmatprep.subr.mxu0 0.0
  %402 = vmatpush1.msra.mxu0 %v357
  %403 = vmatprep.subr.mxu0 0.0
  %404 = vmatpush1.msra.mxu0 %v356
  %405 = vmatprep.subr.mxu0 0.0
  %406 = vmatpush1.msra.mxu0 %v355
  %407 = vmatprep.subr.mxu0 0.0
  %408 = vmatpush2.msra.mxu0 0.0
  %409 = vmatprep.subr.mxu0 0.0
  %410 = vmatpush2.msra.mxu0 0.0
  %411 = vmatprep.subr.mxu0 0.0
  %412 = vmatpush2.msra.mxu0 0.0
  %413 = vmatprep.subr.mxu0 0.0
  %414 = vmatpush2.msra.mxu0 0.0
  %415 = vmatprep.subr.mxu0 0.0
  %416 = vmatpush2.msra.mxu0 0.0
  %417 = vmatprep.subr.mxu0 0.0
  %418 = vmatpush2.msra.mxu0 0.0
  %419 = vmatprep.subr.mxu0 0.0
  %420 = vmatpush2.msra.mxu0 0.0
  %421 = vmatprep.subr.mxu0 0.0
  %422 = vmatpush2.msra.mxu0 0.0
  %423 = vmatprep.subr.mxu0 0.0
  %424 = vmatpush2.msra.mxu0 0.0
  %425 = vmatprep.subr.mxu0 0.0
  %426 = vmatpush2.msra.mxu0 0.0
  %427 = vmatprep.subr.mxu0 0.0
  %428 = vmatpush2.msra.mxu0 0.0
  %429 = vmatprep.subr.mxu0 0.0
  %430 = vmatpush2.msra.mxu0 0.0
  %431 = vmatprep.subr.mxu0 0.0
  %432 = vmatpush2.msra.mxu0 0.0
  %433 = vmatprep.subr.mxu0 0.0
  %434 = vmatpush2.msra.mxu0 0.0
  %435 = vmatprep.subr.mxu0 0.0
  %436 = vmatpush2.msra.mxu0 0.0
  %437 = vmatprep.subr.mxu0 0.0
  %438 = vmatpush2.msra.mxu0 0.0
  %439 = vmatprep.mubr.f32.mxu0 0.0
  %440 = vmatmul.mubr.f32.gmra.mxu0 %v370
  %v441 = vpop.f32.mrf.mxu0
  %v442 = vadd.f32 %v367, %v441
  %v443 = vpop.f32.mrf.mxu0
  %444 = vmatprep.mubr.f32.mxu0 0.0
  %445 = vmatmul.mubr.f32.gmra.mxu0 %v373
  %v446 = vpop.f32.mrf.mxu0
  %v447 = vadd.f32 %v367, %v446
  %v448 = vpop.f32.mrf.mxu0
  %449 = vdwg.mxu0
  %v450 = vadd.f32 %v442, %v263
  %v451 = vadd.f32 %v447, %v264
  %v452 = vld [vmem:[%s1 + $0x20] sm:$0x3]
  %v453 = vsel %vm34, %v450, 0.0
  %454 = vadd.xlane.f32.xlu0 %v453
  %v455 = vpop.xlane.xlu0 %454
  %v456 = vsel %vm34, %v451, 0.0
  %457 = vadd.xlane.f32.xlu0 %v456
  %v458 = vpop.xlane.xlu0 %457
  %v459 = vmul.f32 %v455, %v232
  %v460 = vmul.f32 %v458, %v232
  %v461 = vsub.f32 %v450, %v459
  %v462 = vsub.f32 %v451, %v460
  %v463 = vmul.f32 %v461, %v461
  %v464 = vmul.f32 %v462, %v462
  %v465 = vsel %vm34, %v463, 0.0
  %466 = vadd.xlane.f32.xlu0 %v465
  %v467 = vpop.xlane.xlu0 %466
  %v468 = vsel %vm34, %v464, 0.0
  %469 = vadd.xlane.f32.xlu0 %v468
  %v470 = vpop.xlane.xlu0 %469
  %v471 = vmul.f32 %v467, %v232
  %v472 = vmul.f32 %v470, %v232
  %v473 = vadd.f32 %v471, 1e-05
  %v474 = vadd.f32 %v472, 1e-05
  %v475 = vrsqrt.pop %v473
  %v476 = vrsqrt.pop %v474
  %v477 = vmul.f32 %v461, %v475
  %v478 = vmul.f32 %v462, %v476
  %v479 = vlaneseq
  %v480 = vshrl.u32 %v479, 7
  %v481 = vsub.s32 0, %v480
  %v482 = vrot.slane %v452, %v481
  %v483 = vmul.f32 %v477, %v482
  %v484 = vmul.f32 %v478, %v482
  %v485 = vlaneseq
  %v486 = vshrl.u32 %v485, 7
  %v487 = vsub.s32 1, %v486
  %v488 = vrot.slane %v452, %v487
  %v489 = vadd.f32 %v483, %v488
  %v490 = vadd.f32 %v484, %v488
  %v491 = vld [vmem:[%s1 + $0xe8] sm:$0xf]
  %v493 = vsel %vm34, %v491, 0
  %495 = vmatprep.subr.mxu0 0.0
  %496 = vmatpush1.msra.mxu0 0.0
  %497 = vmatprep.subr.mxu0 0.0
  %498 = vmatpush1.msra.mxu0 0.0
  %499 = vmatprep.subr.mxu0 0.0
  %500 = vmatpush1.msra.mxu0 0.0
  %501 = vmatprep.subr.mxu0 0.0
  %502 = vmatpush1.msra.mxu0 0.0
  %503 = vmatprep.subr.mxu0 0.0
  %504 = vmatpush1.msra.mxu0 0.0
  %505 = vmatprep.subr.mxu0 0.0
  %506 = vmatpush1.msra.mxu0 0.0
  %507 = vmatprep.subr.mxu0 0.0
  %508 = vmatpush1.msra.mxu0 0.0
  %509 = vmatprep.subr.mxu0 0.0
  %510 = vmatpush1.msra.mxu0 0.0
  %511 = vmatprep.subr.mxu0 0.0
  %512 = vmatpush1.msra.mxu0 0.0
  %513 = vmatprep.subr.mxu0 0.0
  %514 = vmatpush1.msra.mxu0 0.0
  %515 = vmatprep.subr.mxu0 0.0
  %516 = vmatpush1.msra.mxu0 0.0
  %517 = vmatprep.subr.mxu0 0.0
  %518 = vmatpush1.msra.mxu0 0.0
  %519 = vmatprep.subr.mxu0 0.0
  %520 = vmatpush1.msra.mxu0 0.0
  %521 = vmatprep.subr.mxu0 0.0
  %522 = vmatpush1.msra.mxu0 0.0
  %523 = vmatprep.subr.mxu0 0.0
  %524 = vmatpush1.msra.mxu0 %v490
  %525 = vmatprep.subr.mxu0 0.0
  %526 = vmatpush1.msra.mxu0 %v489
  %527 = vmatprep.subr.mxu0 0.0
  %528 = vmatpush2.msra.mxu0 0.0
  %529 = vmatprep.subr.mxu0 0.0
  %530 = vmatpush2.msra.mxu0 0.0
  %531 = vmatprep.subr.mxu0 0.0
  %532 = vmatpush2.msra.mxu0 0.0
  %533 = vmatprep.subr.mxu0 0.0
  %534 = vmatpush2.msra.mxu0 0.0
  %535 = vmatprep.subr.mxu0 0.0
  %536 = vmatpush2.msra.mxu0 0.0
  %537 = vmatprep.subr.mxu0 0.0
  %538 = vmatpush2.msra.mxu0 0.0
  %539 = vmatprep.subr.mxu0 0.0
  %540 = vmatpush2.msra.mxu0 0.0
  %541 = vmatprep.subr.mxu0 0.0
  %542 = vmatpush2.msra.mxu0 0.0
  %543 = vmatprep.subr.mxu0 0.0
  %544 = vmatpush2.msra.mxu0 0.0
  %545 = vmatprep.subr.mxu0 0.0
  %546 = vmatpush2.msra.mxu0 0.0
  %547 = vmatprep.subr.mxu0 0.0
  %548 = vmatpush2.msra.mxu0 0.0
  %549 = vmatprep.subr.mxu0 0.0
  %550 = vmatpush2.msra.mxu0 0.0
  %551 = vmatprep.subr.mxu0 0.0
  %552 = vmatpush2.msra.mxu0 0.0
  %553 = vmatprep.subr.mxu0 0.0
  %554 = vmatpush2.msra.mxu0 0.0
  %555 = vmatprep.subr.mxu0 0.0
  %556 = vmatpush2.msra.mxu0 0.0
  %557 = vmatprep.subr.mxu0 0.0
  %558 = vmatpush2.msra.mxu0 0.0
  %559 = vmatprep.mubr.f32.mxu0 0.0
  %560 = vmatmul.mubr.f32.gmra.mxu0 %v493
  %v561 = vpop.f32.mrf.mxu0
  %v562 = vadd.f32 0.0, %v561
  %v563 = vpop.f32.mrf.mxu0
  %564 = vdwg.mxu0
  %v566 = vrot.slane %v562, 2
  %v568 = vsub.f32 %v562, %v566
  %v569 = vld [vmem:[%s1 + $0x88] sm:$0xff]
  %v570 = vld [vmem:[%s1 + $0x90] sm:$0xff]
  %v571 = vld [vmem:[%s1 + $0x98] sm:$0x1]
  %v572 = vlaneseq
  %v573 = vshrl.u32 %v572, 7
  %v574 = vsub.s32 0, %v573
  %v575 = vrot.slane %v571, %v574
  %v577 = vsel %vm34, %v568, 0
  %579 = vmatprep.subr.mxu0 0.0
  %580 = vmatpush1.msra.mxu0 0.0
  %581 = vmatprep.subr.mxu0 0.0
  %582 = vmatpush1.msra.mxu0 0.0
  %583 = vmatprep.subr.mxu0 0.0
  %584 = vmatpush1.msra.mxu0 0.0
  %585 = vmatprep.subr.mxu0 0.0
  %586 = vmatpush1.msra.mxu0 0.0
  %587 = vmatprep.subr.mxu0 0.0
  %588 = vmatpush1.msra.mxu0 0.0
  %589 = vmatprep.subr.mxu0 0.0
  %590 = vmatpush1.msra.mxu0 0.0
  %591 = vmatprep.subr.mxu0 0.0
  %592 = vmatpush1.msra.mxu0 0.0
  %593 = vmatprep.subr.mxu0 0.0
  %594 = vmatpush1.msra.mxu0 0.0
  %595 = vmatprep.subr.mxu0 0.0
  %596 = vmatpush1.msra.mxu0 0.0
  %597 = vmatprep.subr.mxu0 0.0
  %598 = vmatpush1.msra.mxu0 0.0
  %599 = vmatprep.subr.mxu0 0.0
  %600 = vmatpush1.msra.mxu0 0.0
  %601 = vmatprep.subr.mxu0 0.0
  %602 = vmatpush1.msra.mxu0 0.0
  %603 = vmatprep.subr.mxu0 0.0
  %604 = vmatpush1.msra.mxu0 0.0
  %605 = vmatprep.subr.mxu0 0.0
  %606 = vmatpush1.msra.mxu0 0.0
  %607 = vmatprep.subr.mxu0 0.0
  %608 = vmatpush1.msra.mxu0 %v570
  %609 = vmatprep.subr.mxu0 0.0
  %610 = vmatpush1.msra.mxu0 %v569
  %611 = vmatprep.subr.mxu0 0.0
  %612 = vmatpush2.msra.mxu0 0.0
  %613 = vmatprep.subr.mxu0 0.0
  %614 = vmatpush2.msra.mxu0 0.0
  %615 = vmatprep.subr.mxu0 0.0
  %616 = vmatpush2.msra.mxu0 0.0
  %617 = vmatprep.subr.mxu0 0.0
  %618 = vmatpush2.msra.mxu0 0.0
  %619 = vmatprep.subr.mxu0 0.0
  %620 = vmatpush2.msra.mxu0 0.0
  %621 = vmatprep.subr.mxu0 0.0
  %622 = vmatpush2.msra.mxu0 0.0
  %623 = vmatprep.subr.mxu0 0.0
  %624 = vmatpush2.msra.mxu0 0.0
  %625 = vmatprep.subr.mxu0 0.0
  %626 = vmatpush2.msra.mxu0 0.0
  %627 = vmatprep.subr.mxu0 0.0
  %628 = vmatpush2.msra.mxu0 0.0
  %629 = vmatprep.subr.mxu0 0.0
  %630 = vmatpush2.msra.mxu0 0.0
  %631 = vmatprep.subr.mxu0 0.0
  %632 = vmatpush2.msra.mxu0 0.0
  %633 = vmatprep.subr.mxu0 0.0
  %634 = vmatpush2.msra.mxu0 0.0
  %635 = vmatprep.subr.mxu0 0.0
  %636 = vmatpush2.msra.mxu0 0.0
  %637 = vmatprep.subr.mxu0 0.0
  %638 = vmatpush2.msra.mxu0 0.0
  %639 = vmatprep.subr.mxu0 0.0
  %640 = vmatpush2.msra.mxu0 0.0
  %641 = vmatprep.subr.mxu0 0.0
  %642 = vmatpush2.msra.mxu0 0.0
  %643 = vmatprep.mubr.f32.mxu0 0.0
  %644 = vmatmul.mubr.f32.gmra.mxu0 %v577
  %v645 = vpop.f32.mrf.mxu0
  %v646 = vadd.f32 %v575, %v645
  %v647 = vpop.f32.mrf.mxu0
  %648 = vdwg.mxu0
  %v649 = vld [vmem:[%s1 + $0xa0] sm:$0xff]
  %v650 = vld [vmem:[%s1 + $0xa8] sm:$0xff]
  %652 = vrot.lane.b32.xlu0 %v646, 112
  %v653 = vpop.permute.xlu0 %652
  %v655 = vmul.f32 %v646, %v653
  %v656 = vrot.slane %v646, 1
  %657 = vrot.lane.b32.xlu0 %v656, 112
  %v658 = vpop.permute.xlu0 %657
  %v660 = vmul.f32 %v646, %v658
  %v661 = vrot.slane %v646, 7
  %662 = vrot.lane.b32.xlu0 %v661, 112
  %v663 = vpop.permute.xlu0 %662
  %v665 = vmul.f32 %v646, %v663
  %v667 = vrot.slane %v660, 7
  %v670 = vrot.slane %v665, 7
  %v673 = vrot.slane %v655, 6
  %vm675 = vcmask 1040384
  %v676 = vsel %vm675, %v655, %v667
  %vm677 = vcmask 1041408
  %v678 = vsel %vm677, %v676, %v670
  %vm679 = vcmask 1042432
  %v680 = vsel %vm679, %v678, %v673
  %v682 = vsel %vm34, %v680, 0
  %684 = vmatprep.subr.mxu0 0.0
  %685 = vmatpush1.msra.mxu0 0.0
  %686 = vmatprep.subr.mxu0 0.0
  %687 = vmatpush1.msra.mxu0 0.0
  %688 = vmatprep.subr.mxu0 0.0
  %689 = vmatpush1.msra.mxu0 0.0
  %690 = vmatprep.subr.mxu0 0.0
  %691 = vmatpush1.msra.mxu0 0.0
  %692 = vmatprep.subr.mxu0 0.0
  %693 = vmatpush1.msra.mxu0 0.0
  %694 = vmatprep.subr.mxu0 0.0
  %695 = vmatpush1.msra.mxu0 0.0
  %696 = vmatprep.subr.mxu0 0.0
  %697 = vmatpush1.msra.mxu0 0.0
  %698 = vmatprep.subr.mxu0 0.0
  %699 = vmatpush1.msra.mxu0 0.0
  %700 = vmatprep.subr.mxu0 0.0
  %701 = vmatpush1.msra.mxu0 0.0
  %702 = vmatprep.subr.mxu0 0.0
  %703 = vmatpush1.msra.mxu0 0.0
  %704 = vmatprep.subr.mxu0 0.0
  %705 = vmatpush1.msra.mxu0 0.0
  %706 = vmatprep.subr.mxu0 0.0
  %707 = vmatpush1.msra.mxu0 0.0
  %708 = vmatprep.subr.mxu0 0.0
  %709 = vmatpush1.msra.mxu0 0.0
  %710 = vmatprep.subr.mxu0 0.0
  %711 = vmatpush1.msra.mxu0 0.0
  %712 = vmatprep.subr.mxu0 0.0
  %713 = vmatpush1.msra.mxu0 %v650
  %714 = vmatprep.subr.mxu0 0.0
  %715 = vmatpush1.msra.mxu0 %v649
  %716 = vmatprep.subr.mxu0 0.0
  %717 = vmatpush2.msra.mxu0 0.0
  %718 = vmatprep.subr.mxu0 0.0
  %719 = vmatpush2.msra.mxu0 0.0
  %720 = vmatprep.subr.mxu0 0.0
  %721 = vmatpush2.msra.mxu0 0.0
  %722 = vmatprep.subr.mxu0 0.0
  %723 = vmatpush2.msra.mxu0 0.0
  %724 = vmatprep.subr.mxu0 0.0
  %725 = vmatpush2.msra.mxu0 0.0
  %726 = vmatprep.subr.mxu0 0.0
  %727 = vmatpush2.msra.mxu0 0.0
  %728 = vmatprep.subr.mxu0 0.0
  %729 = vmatpush2.msra.mxu0 0.0
  %730 = vmatprep.subr.mxu0 0.0
  %731 = vmatpush2.msra.mxu0 0.0
  %732 = vmatprep.subr.mxu0 0.0
  %733 = vmatpush2.msra.mxu0 0.0
  %734 = vmatprep.subr.mxu0 0.0
  %735 = vmatpush2.msra.mxu0 0.0
  %736 = vmatprep.subr.mxu0 0.0
  %737 = vmatpush2.msra.mxu0 0.0
  %738 = vmatprep.subr.mxu0 0.0
  %739 = vmatpush2.msra.mxu0 0.0
  %740 = vmatprep.subr.mxu0 0.0
  %741 = vmatpush2.msra.mxu0 0.0
  %742 = vmatprep.subr.mxu0 0.0
  %743 = vmatpush2.msra.mxu0 0.0
  %744 = vmatprep.subr.mxu0 0.0
  %745 = vmatpush2.msra.mxu0 0.0
  %746 = vmatprep.subr.mxu0 0.0
  %747 = vmatpush2.msra.mxu0 0.0
  %748 = vmatprep.mubr.f32.mxu0 0.0
  %749 = vmatmul.mubr.f32.gmra.mxu0 %v682
  %v750 = vpop.f32.mrf.mxu0
  %v751 = vadd.f32 0.0, %v750
  %v752 = vpop.f32.mrf.mxu0
  %753 = vdwg.mxu0
  %v755 = vrot.slane %v751, 1
  %v757 = vmax.f32 %v751, %v755
  %v758 = vsub.f32 %v751, %v757
  %v759 = vmul.f32 %v758, 1.442695
  %v760 = vpow.pop %v759
  %v762 = vrot.slane %v757, 7
  %v764 = vsub.f32 %v751, %v762
  %v765 = vmul.f32 %v764, 1.442695
  %v766 = vpow.pop %v765
  %v768 = vrot.slane %v766, 1
  %v770 = vadd.f32 %v760, %v768
  %v771 = vrcp.pop %v770
  %v772 = vmul.f32 %v760, %v771
  %v774 = vrot.slane %v771, 7
  %v776 = vmul.f32 %v766, %v774
  %v777 = vsel %vm675, %v772, %v776
  %v778 = vsel %vm677, %v777, %v772
  %v779 = vsel %vm679, %v778, %v776
  %vm780 = vcmask 64512
  %v782 = vsel %vm780, %v779, 0
  %v785 = vsel %vm780, %v649, 0
  %v788 = vsel %vm780, %v650, 0
  %790 = vmatprep.subr.mxu0 0.0
  %791 = vmatpush1.xpose.msra.mxu0 0.0
  %792 = vmatprep.subr.mxu0 0.0
  %793 = vmatpush1.xpose.msra.mxu0 0.0
  %794 = vmatprep.subr.mxu0 0.0
  %795 = vmatpush1.xpose.msra.mxu0 0.0
  %796 = vmatprep.subr.mxu0 0.0
  %797 = vmatpush1.xpose.msra.mxu0 0.0
  %798 = vmatprep.subr.mxu0 0.0
  %799 = vmatpush1.xpose.msra.mxu0 0.0
  %800 = vmatprep.subr.mxu0 0.0
  %801 = vmatpush1.xpose.msra.mxu0 0.0
  %802 = vmatprep.subr.mxu0 0.0
  %803 = vmatpush1.xpose.msra.mxu0 0.0
  %804 = vmatprep.subr.mxu0 0.0
  %805 = vmatpush1.xpose.msra.mxu0 0.0
  %806 = vmatprep.subr.mxu0 0.0
  %807 = vmatpush1.xpose.msra.mxu0 0.0
  %808 = vmatprep.subr.mxu0 0.0
  %809 = vmatpush1.xpose.msra.mxu0 0.0
  %810 = vmatprep.subr.mxu0 0.0
  %811 = vmatpush1.xpose.msra.mxu0 0.0
  %812 = vmatprep.subr.mxu0 0.0
  %813 = vmatpush1.xpose.msra.mxu0 0.0
  %814 = vmatprep.subr.mxu0 0.0
  %815 = vmatpush1.xpose.msra.mxu0 0.0
  %816 = vmatprep.subr.mxu0 0.0
  %817 = vmatpush1.xpose.msra.mxu0 0.0
  %818 = vmatprep.subr.mxu0 0.0
  %819 = vmatpush1.xpose.msra.mxu0 %v788
  %820 = vmatprep.subr.mxu0 0.0
  %821 = vmatpush1.xpose.msra.mxu0 %v785
  %822 = vmatprep.subr.mxu0 0.0
  %823 = vmatpush2.xpose.msra.mxu0 0.0
  %824 = vmatprep.subr.mxu0 0.0
  %825 = vmatpush2.xpose.msra.mxu0 0.0
  %826 = vmatprep.subr.mxu0 0.0
  %827 = vmatpush2.xpose.msra.mxu0 0.0
  %828 = vmatprep.subr.mxu0 0.0
  %829 = vmatpush2.xpose.msra.mxu0 0.0
  %830 = vmatprep.subr.mxu0 0.0
  %831 = vmatpush2.xpose.msra.mxu0 0.0
  %832 = vmatprep.subr.mxu0 0.0
  %833 = vmatpush2.xpose.msra.mxu0 0.0
  %834 = vmatprep.subr.mxu0 0.0
  %835 = vmatpush2.xpose.msra.mxu0 0.0
  %836 = vmatprep.subr.mxu0 0.0
  %837 = vmatpush2.xpose.msra.mxu0 0.0
  %838 = vmatprep.subr.mxu0 0.0
  %839 = vmatpush2.xpose.msra.mxu0 0.0
  %840 = vmatprep.subr.mxu0 0.0
  %841 = vmatpush2.xpose.msra.mxu0 0.0
  %842 = vmatprep.subr.mxu0 0.0
  %843 = vmatpush2.xpose.msra.mxu0 0.0
  %844 = vmatprep.subr.mxu0 0.0
  %845 = vmatpush2.xpose.msra.mxu0 0.0
  %846 = vmatprep.subr.mxu0 0.0
  %847 = vmatpush2.xpose.msra.mxu0 0.0
  %848 = vmatprep.subr.mxu0 0.0
  %849 = vmatpush2.xpose.msra.mxu0 0.0
  %850 = vmatprep.subr.mxu0 0.0
  %851 = vmatpush2.xpose.msra.mxu0 0.0
  %852 = vmatprep.subr.mxu0 0.0
  %853 = vmatpush2.xpose.msra.mxu0 0.0
  %854 = vmatprep.mubr.f32.mxu0 0.0
  %855 = vmatmul.mubr.f32.gmra.mxu0 %v782
  %v856 = vpop.f32.mrf.mxu0
  %v857 = vadd.f32 0.0, %v856
  %v858 = vpop.f32.mrf.mxu0
  %859 = vdwg.mxu0
  %860 = vrot.lane.b32.xlu0 %v646, 96
  %v861 = vpop.permute.xlu0 %860
  %v863 = vmul.f32 %v857, %v861
  %v865 = vrot.slane %v863, 1
  %v867 = vadd.f32 %v863, %v865
  %v868 = vrot.slane %v646, 6
  %869 = vrot.lane.b32.xlu0 %v868, 96
  %v870 = vpop.permute.xlu0 %869
  %v872 = vmul.f32 %v857, %v870
  %v874 = vrot.slane %v872, 1
  %v876 = vadd.f32 %v872, %v874
  %v878 = vrot.slane %v876, 1
  %v880 = vsel %vm675, %v867, %v878
  %v881 = vld [vmem:[%s1 + $0xb0] sm:$0xff]
  %v882 = vld [vmem:[%s1 + $0xb8] sm:$0xff]
  %v883 = vld [vmem:[%s1 + $0xc0] sm:$0xff]
  %v884 = vld [vmem:[%s1 + $0xc8] sm:$0xff]
  %v885 = vsel %vm34, %v566, 0
  %887 = vmatprep.subr.mxu0 0.0
  %888 = vmatpush1.msra.mxu0 0.0
  %889 = vmatprep.subr.mxu0 0.0
  %890 = vmatpush1.msra.mxu0 0.0
  %891 = vmatprep.subr.mxu0 0.0
  %892 = vmatpush1.msra.mxu0 0.0
  %893 = vmatprep.subr.mxu0 0.0
  %894 = vmatpush1.msra.mxu0 0.0
  %895 = vmatprep.subr.mxu0 0.0
  %896 = vmatpush1.msra.mxu0 0.0
  %897 = vmatprep.subr.mxu0 0.0
  %898 = vmatpush1.msra.mxu0 0.0
  %899 = vmatprep.subr.mxu0 0.0
  %900 = vmatpush1.msra.mxu0 0.0
  %901 = vmatprep.subr.mxu0 0.0
  %902 = vmatpush1.msra.mxu0 0.0
  %903 = vmatprep.subr.mxu0 0.0
  %904 = vmatpush1.msra.mxu0 0.0
  %905 = vmatprep.subr.mxu0 0.0
  %906 = vmatpush1.msra.mxu0 0.0
  %907 = vmatprep.subr.mxu0 0.0
  %908 = vmatpush1.msra.mxu0 0.0
  %909 = vmatprep.subr.mxu0 0.0
  %910 = vmatpush1.msra.mxu0 0.0
  %911 = vmatprep.subr.mxu0 0.0
  %912 = vmatpush1.msra.mxu0 0.0
  %913 = vmatprep.subr.mxu0 0.0
  %914 = vmatpush1.msra.mxu0 0.0
  %915 = vmatprep.subr.mxu0 0.0
  %916 = vmatpush1.msra.mxu0 %v884
  %917 = vmatprep.subr.mxu0 0.0
  %918 = vmatpush1.msra.mxu0 %v883
  %919 = vmatprep.subr.mxu0 0.0
  %920 = vmatpush2.msra.mxu0 0.0
  %921 = vmatprep.subr.mxu0 0.0
  %922 = vmatpush2.msra.mxu0 0.0
  %923 = vmatprep.subr.mxu0 0.0
  %924 = vmatpush2.msra.mxu0 0.0
  %925 = vmatprep.subr.mxu0 0.0
  %926 = vmatpush2.msra.mxu0 0.0
  %927 = vmatprep.subr.mxu0 0.0
  %928 = vmatpush2.msra.mxu0 0.0
  %929 = vmatprep.subr.mxu0 0.0
  %930 = vmatpush2.msra.mxu0 0.0
  %931 = vmatprep.subr.mxu0 0.0
  %932 = vmatpush2.msra.mxu0 0.0
  %933 = vmatprep.subr.mxu0 0.0
  %934 = vmatpush2.msra.mxu0 0.0
  %935 = vmatprep.subr.mxu0 0.0
  %936 = vmatpush2.msra.mxu0 0.0
  %937 = vmatprep.subr.mxu0 0.0
  %938 = vmatpush2.msra.mxu0 0.0
  %939 = vmatprep.subr.mxu0 0.0
  %940 = vmatpush2.msra.mxu0 0.0
  %941 = vmatprep.subr.mxu0 0.0
  %942 = vmatpush2.msra.mxu0 0.0
  %943 = vmatprep.subr.mxu0 0.0
  %944 = vmatpush2.msra.mxu0 0.0
  %945 = vmatprep.subr.mxu0 0.0
  %946 = vmatpush2.msra.mxu0 0.0
  %947 = vmatprep.subr.mxu0 0.0
  %948 = vmatpush2.msra.mxu0 0.0
  %949 = vmatprep.subr.mxu0 0.0
  %950 = vmatpush2.msra.mxu0 0.0
  %951 = vmatprep.mubr.f32.mxu0 0.0
  %952 = vmatmul.mubr.f32.gmra.mxu0 %v885
  %v953 = vpop.f32.mrf.mxu0
  %v954 = vadd.f32 0.0, %v953
  %v955 = vpop.f32.mrf.mxu0
  %956 = vdwg.mxu0
  %v958 = vsel %vm34, %v880, 0
  %960 = vmatprep.subr.mxu0 0.0
  %961 = vmatpush1.msra.mxu0 0.0
  %962 = vmatprep.subr.mxu0 0.0
  %963 = vmatpush1.msra.mxu0 0.0
  %964 = vmatprep.subr.mxu0 0.0
  %965 = vmatpush1.msra.mxu0 0.0
  %966 = vmatprep.subr.mxu0 0.0
  %967 = vmatpush1.msra.mxu0 0.0
  %968 = vmatprep.subr.mxu0 0.0
  %969 = vmatpush1.msra.mxu0 0.0
  %970 = vmatprep.subr.mxu0 0.0
  %971 = vmatpush1.msra.mxu0 0.0
  %972 = vmatprep.subr.mxu0 0.0
  %973 = vmatpush1.msra.mxu0 0.0
  %974 = vmatprep.subr.mxu0 0.0
  %975 = vmatpush1.msra.mxu0 0.0
  %976 = vmatprep.subr.mxu0 0.0
  %977 = vmatpush1.msra.mxu0 0.0
  %978 = vmatprep.subr.mxu0 0.0
  %979 = vmatpush1.msra.mxu0 0.0
  %980 = vmatprep.subr.mxu0 0.0
  %981 = vmatpush1.msra.mxu0 0.0
  %982 = vmatprep.subr.mxu0 0.0
  %983 = vmatpush1.msra.mxu0 0.0
  %984 = vmatprep.subr.mxu0 0.0
  %985 = vmatpush1.msra.mxu0 0.0
  %986 = vmatprep.subr.mxu0 0.0
  %987 = vmatpush1.msra.mxu0 0.0
  %988 = vmatprep.subr.mxu0 0.0
  %989 = vmatpush1.msra.mxu0 %v882
  %990 = vmatprep.subr.mxu0 0.0
  %991 = vmatpush1.msra.mxu0 %v881
  %992 = vmatprep.subr.mxu0 0.0
  %993 = vmatpush2.msra.mxu0 0.0
  %994 = vmatprep.subr.mxu0 0.0
  %995 = vmatpush2.msra.mxu0 0.0
  %996 = vmatprep.subr.mxu0 0.0
  %997 = vmatpush2.msra.mxu0 0.0
  %998 = vmatprep.subr.mxu0 0.0
  %999 = vmatpush2.msra.mxu0 0.0
  %1000 = vmatprep.subr.mxu0 0.0
  %1001 = vmatpush2.msra.mxu0 0.0
  %1002 = vmatprep.subr.mxu0 0.0
  %1003 = vmatpush2.msra.mxu0 0.0
  %1004 = vmatprep.subr.mxu0 0.0
  %1005 = vmatpush2.msra.mxu0 0.0
  %1006 = vmatprep.subr.mxu0 0.0
  %1007 = vmatpush2.msra.mxu0 0.0
  %1008 = vmatprep.subr.mxu0 0.0
  %1009 = vmatpush2.msra.mxu0 0.0
  %1010 = vmatprep.subr.mxu0 0.0
  %1011 = vmatpush2.msra.mxu0 0.0
  %1012 = vmatprep.subr.mxu0 0.0
  %1013 = vmatpush2.msra.mxu0 0.0
  %1014 = vmatprep.subr.mxu0 0.0
  %1015 = vmatpush2.msra.mxu0 0.0
  %1016 = vmatprep.subr.mxu0 0.0
  %1017 = vmatpush2.msra.mxu0 0.0
  %1018 = vmatprep.subr.mxu0 0.0
  %1019 = vmatpush2.msra.mxu0 0.0
  %1020 = vmatprep.subr.mxu0 0.0
  %1021 = vmatpush2.msra.mxu0 0.0
  %1022 = vmatprep.subr.mxu0 0.0
  %1023 = vmatpush2.msra.mxu0 0.0
  %1024 = vmatprep.mubr.f32.mxu0 0.0
  %1025 = vmatmul.mubr.f32.gmra.mxu0 %v958
  %v1026 = vpop.f32.mrf.mxu0
  %v1027 = vadd.f32 %v954, %v1026
  %v1028 = vpop.f32.mrf.mxu0
  %1029 = vdwg.mxu0
  %v1030 = vld [vmem:[%s1 + $0xd0] sm:$0x1]
  %v1031 = vlaneseq
  %v1032 = vshrl.u32 %v1031, 7
  %v1033 = vsub.s32 0, %v1032
  %v1034 = vrot.slane %v1030, %v1033
  %v1035 = vadd.f32 %v1027, %v1034
  %vm1036 = vcmask 1024
  %1037 = vst.msk [vmem:[%s2] sm:$0x3] %vm1036, %v1035
  // Predicated region
  $region10: #{tpu_custom_call.1} parent=0 // pred_check
    _
  $region11: #{tpu_custom_call.1} parent=0 // pred_check_branch
    %1039 = sbr.rel (0) target = $region13
  $region12: #{tpu_custom_call.1} parent=0 // pred_region
    _
  $region13: #{tpu_custom_call.1} parent=0 // pred_fallthru
    _
  // Predicated region
  $region14: #{tpu_custom_call.1} parent=0 // pred_check
    _
  $region15: #{tpu_custom_call.1} parent=0 // pred_check_branch
    %1041 = sbr.rel (0) target = $region17
  $region16: #{tpu_custom_call.1} parent=0 // pred_region
    _
  $region17: #{tpu_custom_call.1} parent=0 // pred_fallthru
    _

</llo_original>
